<compile_context>
chip_gen: v7x
topology: tpu7x:2x2x1
jax: 0.10.0
libtpu: 0.0.40
codegen_flags: <defaults>
</compile_context>

<pallas_src>
import functools

import jax
import jax.numpy as jnp
from jax.experimental import pallas as pl
from jax.experimental.pallas import tpu as pltpu


def _alignment_kernel(x_ref, wp_ref, vp_ref, slen_ref, out_ref):
    # x_ref:    (TB, H)   decoder hidden states (f32 or bf16)
    # wp_ref:   (H, H)    W_p pre-transposed to (in, out): apply as x @ wp
    # vp_ref:   (1, H)    V_p weight row
    # slen_ref: (1, TB)   source lengths, lane-dense
    # out_ref:  (1, TB)   result, lane-dense
    wp = wp_ref[...]
    # Cast activations to the MXU operand dtype *inside* the kernel (cheap VPU
    # cast), so the wrapper never pays a separate HBM convert pass over x.
    x = x_ref[...].astype(wp.dtype)

    # pre_vec = tanh(x @ W_p.T): one MXU matmul (f32 accumulate) + EUP tanh.
    pre_vec = jnp.tanh(jnp.dot(x, wp, preferred_element_type=jnp.float32))  # (TB, H) f32

    # V_p projection as VPU multiply + XLU lane-reduce (no second MXU matmul,
    # no (1,H)->(H,1) weight transpose).
    vp = vp_ref[...].astype(jnp.float32)                          # (1, H)
    pre_scalar = jnp.sum(pre_vec * vp, axis=-1, keepdims=True)    # (TB, 1) f32

    # Tiny (TB,1)->(1,TB) transpose (XLU has slack here) so the final store is
    # lane-dense (unmasked vst) instead of TB/8 masked single-lane stores.
    pre_row = jnp.transpose(pre_scalar)                           # (1, TB)

    out_ref[...] = slen_ref[...] * jax.nn.sigmoid(pre_row)


def prepare_alignment_params(w_p, v_p, mxu_dtype=jnp.float32):
    """One-time weight layout prep (do at param init/load time, NOT per call).

    Transposes W_p to (in, out) and casts to the MXU operand dtype so the
    per-step path never pays an extra HBM transpose/convert pass over H*H.
    mxu_dtype=jnp.bfloat16 is safe on v5e as well as v6e/v7x: the kernel
    accumulates and runs tanh/sigmoid in f32; only MXU operands are bf16
    (halves weight DMA bytes for this HBM-bound kernel).
    """
    wp_t = jnp.asarray(w_p).T.astype(mxu_dtype)                   # (H_in, H_out)
    vp = jnp.asarray(v_p).reshape(1, -1).astype(jnp.float32)      # (1, H)
    return wp_t, vp


@functools.partial(jax.jit, static_argnames=("block_b",))
def alignment_predictor(decoder_hidden, source_len, wp_t, vp, *, block_b=512):
    """decoder_hidden: (B, H); source_len: (B,); wp_t/vp from
    prepare_alignment_params(). Returns (B,) f32.

    block_b: batch tile. Keep it a multiple of 256 (MXU tile height on
    v6e/v7x; 128 on v5e); the 512 default amortizes the ~0.35us per-grid-step
    overhead. On v7x, pick block_b so cdiv(B, block_b) is >= 2 (ideally even)
    so both TensorCores get tiles under the "parallel" grid axis.
    """
    B, H = decoder_hidden.shape
    assert wp_t.shape == (H, H) and vp.shape == (1, H)

    tb = B if B <= block_b else block_b
    num_tiles = pl.cdiv(B, tb)
    padded_b = num_tiles * tb

    slen = jnp.asarray(source_len).reshape(1, B).astype(jnp.float32)

    # Explicit VMEM budget: resident (H,H) weight (double-buffered by the auto
    # pipeline) + activation/output tiles + f32 intermediates, with slack.
    # The default scoped limit (16-32 MiB) is far below physical VMEM.
    itemsize_w = jnp.dtype(wp_t.dtype).itemsize
    itemsize_x = jnp.dtype(decoder_hidden.dtype).itemsize
    needed = (2 * H * H * itemsize_w          # wp (double-buffered)
              + 2 * tb * H * itemsize_x       # x tiles (double-buffered)
              + tb * H * 4                    # pre_vec f32 intermediate
              + 2 * H * 4                     # vp
              + 4 * tb * 4)                   # slen / out tiles
    vmem_limit = int(min(100 * 1024 * 1024, max(32 * 1024 * 1024, 2 * needed)))
    # TODO(synk): on v7x (64 MiB VMEM/TC) with very large H, single-buffer the
    # constant-index weight spec (pipeline_mode=pl.Buffered(1)) and/or add a
    # second "arbitrary" grid axis over H_out with a (tb, 1) partial-sum
    # accumulator so H*H*dtype no longer has to fit in one block.

    out = pl.pallas_call(
        _alignment_kernel,
        out_shape=jax.ShapeDtypeStruct((1, padded_b), jnp.float32),
        grid=(num_tiles,),
        in_specs=[
            pl.BlockSpec((tb, H), lambda i: (i, 0)),   # x: blocked over batch rows
            pl.BlockSpec((H, H), lambda i: (0, 0)),    # W_p: resident across tiles
            pl.BlockSpec((1, H), lambda i: (0, 0)),    # V_p: resident
            pl.BlockSpec((1, tb), lambda i: (0, i)),   # source_len: lane-dense
        ],
        out_specs=pl.BlockSpec((1, tb), lambda i: (0, i)),  # lane-dense output
        compiler_params=pltpu.CompilerParams(
            # Independent batch tiles: lets v7x's 2 TensorCores split the grid;
            # harmless on single-TC v5e/v6e.
            dimension_semantics=("parallel",),
            vmem_limit_bytes=vmem_limit,
        ),
    )(decoder_hidden, wp_t, vp, slen)

    return out[0, :B]


if __name__ == "__main__":
    # Small shapes consistent with the module's forward pass.
    batch = 8
    hidden_size = 32
    max_len = 16

    key = jax.random.PRNGKey(0)
    k_x, k_wp, k_vp, k_len = jax.random.split(key, 4)

    # Deterministic parameter init matching nn.init.uniform_(-0.1, 0.1).
    w_p = jax.random.uniform(k_wp, (hidden_size, hidden_size),
                             minval=-0.1, maxval=0.1, dtype=jnp.float32)
    v_p = jax.random.uniform(k_vp, (1, hidden_size),
                             minval=-0.1, maxval=0.1, dtype=jnp.float32)

    decoder_hidden = jax.random.normal(k_x, (batch, hidden_size), dtype=jnp.float32)
    source_len = jax.random.randint(
        k_len, (batch,), 1, max_len + 1).astype(jnp.float32)

    # Pure-JAX reference.
    ref = source_len * jax.nn.sigmoid(
        (jnp.tanh(decoder_hidden @ w_p.T) @ v_p.T)[:, 0]
    )

    # f32 MXU path (strict tolerance).
    wp_f32, vp_f32 = prepare_alignment_params(w_p, v_p, jnp.float32)
    out_f32 = jax.block_until_ready(
        alignment_predictor(decoder_hidden, source_len, wp_f32, vp_f32))
    assert out_f32.shape == (batch,)
    assert jnp.allclose(out_f32, ref, atol=1e-5), (out_f32, ref)

    # bf16 MXU operand path (safe on v5e/v6e/v7x): f32 accumulate + f32 tanh/sigmoid.
    wp_bf16, vp_b = prepare_alignment_params(w_p, v_p, jnp.bfloat16)
    out_bf16 = jax.block_until_ready(
        alignment_predictor(decoder_hidden, source_len, wp_bf16, vp_b))
    assert jnp.allclose(out_bf16, ref, atol=2e-2, rtol=2e-2), (out_bf16, ref)

    print("KERNEL_OK")
</pallas_src>

<mosaic_0001>
module attributes {stable_mosaic.version = 11 : i64} {
  func.func @_alignment_kernel(%arg0: i32, %arg1: memref<8x32xf32, #tpu.memory_space<vmem>>, %arg2: memref<32x32xf32, #tpu.memory_space<vmem>>, %arg3: memref<1x32xf32, #tpu.memory_space<vmem>>, %arg4: memref<1x8xf32, #tpu.memory_space<vmem>>, %arg5: memref<1x8xf32, #tpu.memory_space<vmem>>) attributes {dimension_semantics = [#tpu.dimension_semantics<parallel>], iteration_bounds = array<i64: 1>, scalar_prefetch = 0 : i64, scratch_operands = 0 : i64, tpu.core_type = #tpu.core_type<tc>, window_params = [{transform_indices = @transform_0, window_bounds = array<i64: 8, 32>}, {pipeline_mode = #tpu.pipeline_mode<synchronous>, transform_indices = @transform_1, window_bounds = array<i64: 32, 32>}, {pipeline_mode = #tpu.pipeline_mode<synchronous>, transform_indices = @transform_2, window_bounds = array<i64: 1, 32>}, {transform_indices = @transform_3, window_bounds = array<i64: 1, 8>}, {transform_indices = @transform_4, window_bounds = array<i64: 1, 8>}]} {
    %c0 = arith.constant 0 : index
    %c0_0 = arith.constant 0 : index
    %0 = vector.load %arg2[%c0, %c0_0] : memref<32x32xf32, #tpu.memory_space<vmem>>, vector<32x32xf32>
    %c0_1 = arith.constant 0 : index
    %c0_2 = arith.constant 0 : index
    %1 = vector.load %arg1[%c0_1, %c0_2] : memref<8x32xf32, #tpu.memory_space<vmem>>, vector<8x32xf32>
    %cst = arith.constant dense<0.000000e+00> : vector<8x32xf32>
    %2 = tpu.matmul %1, %0, %cst {dimension_numbers = #tpu.dot_dimension_numbers<[1], [0], [0], [1], [0, 0, 1, 1], [], []>} : vector<8x32xf32>, vector<32x32xf32>, vector<8x32xf32> -> vector<8x32xf32>
    %3 = math.tanh %2 : vector<8x32xf32>
    %c0_3 = arith.constant 0 : index
    %c0_4 = arith.constant 0 : index
    %4 = vector.load %arg3[%c0_3, %c0_4] : memref<1x32xf32, #tpu.memory_space<vmem>>, vector<1x32xf32>
    %5 = vector.broadcast %4 : vector<1x32xf32> to vector<8x32xf32>
    %6 = arith.mulf %3, %5 : vector<8x32xf32>
    %cst_5 = arith.constant dense<0.000000e+00> : vector<8xf32>
    %7 = vector.multi_reduction <add>, %6, %cst_5 [1] : vector<8x32xf32> to vector<8xf32>
    %8 = vector.shape_cast %7 : vector<8xf32> to vector<8x1xf32>
    %9 = tpu.transpose %8, [1, 0] : vector<8x1xf32> -> vector<1x8xf32>
    %c0_6 = arith.constant 0 : index
    %c0_7 = arith.constant 0 : index
    %10 = vector.load %arg4[%c0_6, %c0_7] : memref<1x8xf32, #tpu.memory_space<vmem>>, vector<1x8xf32>
    %11 = arith.negf %9 : vector<1x8xf32>
    %12 = math.exp %11 : vector<1x8xf32>
    %cst_8 = arith.constant 1.000000e+00 : f32
    %13 = vector.broadcast %cst_8 : f32 to vector<1x8xf32>
    %14 = arith.addf %13, %12 : vector<1x8xf32>
    %15 = arith.divf %13, %14 : vector<1x8xf32>
    %16 = arith.mulf %10, %15 : vector<1x8xf32>
    %c0_9 = arith.constant 0 : index
    %c0_10 = arith.constant 0 : index
    %17 = vector.load %arg5[%c0_9, %c0_10] : memref<1x8xf32, #tpu.memory_space<vmem>>, vector<1x8xf32>
    tpu.vector_store %arg5[%c0_9, %c0_10], %16 {strides = array<i32>} : memref<1x8xf32, #tpu.memory_space<vmem>>, vector<1x8xf32>,
    return
  }
  func.func @transform_0(%arg0: i32) -> (i32, i32) {
    %c0_i32 = arith.constant 0 : i32
    %c0_i32_0 = arith.constant 0 : i32
    return %arg0, %c0_i32 : i32, i32
  }
  func.func @transform_1(%arg0: i32) -> (i32, i32) {
    %c0_i32 = arith.constant 0 : i32
    %c0_i32_0 = arith.constant 0 : i32
    %c0_i32_1 = arith.constant 0 : i32
    return %c0_i32, %c0_i32_0 : i32, i32
  }
  func.func @transform_2(%arg0: i32) -> (i32, i32) {
    %c0_i32 = arith.constant 0 : i32
    %c0_i32_0 = arith.constant 0 : i32
    %c0_i32_1 = arith.constant 0 : i32
    return %c0_i32, %c0_i32_0 : i32, i32
  }
  func.func @transform_3(%arg0: i32) -> (i32, i32) {
    %c0_i32 = arith.constant 0 : i32
    %c0_i32_0 = arith.constant 0 : i32
    return %c0_i32, %arg0 : i32, i32
  }
  func.func @transform_4(%arg0: i32) -> (i32, i32) {
    %c0_i32 = arith.constant 0 : i32
    %c0_i32_0 = arith.constant 0 : i32
    return %c0_i32, %arg0 : i32, i32
  }
}

</mosaic_0001>

<llo_original>
// kernel: alignment_predictor.1
$region0: #{alignment_predictor.1}
  #allocation0 [shape = 'u32[]', space=smem, size = 0x4, offset = 0x4, fixed_abs, tag = 'smem constant byte address 0x4 - core index']
  #allocation1 [shape = 'u32[144,128]{1,0:T(1,128)}', space=vmem, size = 0x12000, scoped, tag = 'internal scratch']
  %s0 = inlined_call_operand.hbm [shape: f32[8,32], index: 0, kind: input, shape index: {}]
  %s1 = inlined_call_operand.hbm [shape: f32[32,32], index: 1, kind: input, shape index: {}]
  %s2 = inlined_call_operand.vmem [shape: f32[1,32], index: 2, kind: input, shape index: {}]
  %s3 = inlined_call_operand.vmem [shape: f32[1,8], index: 3, kind: input, shape index: {}]
  %s4 = inlined_call_operand.hbm [shape: f32[1,8], index: 4, kind: output, shape index: {}]
  %s5 = sld [smem:[#allocation0]]
  $region34: #{alignment_predictor.1} parent=0
    _
  %s7 = ssub.s32 1, %s5
  %s8 = scalar_select 0, %s7, %s5
  $region1: #{alignment_predictor.1} parent=0
    #allocation2 [shape = 'u8[4096]{0}', space=vmem, size = 0x1000, scoped, tag = 'input window, operand 0, single buffered']
    #allocation3 [shape = 's32[1]{0}', space=sflag, size = 0x4, scoped, tag = 'scoped memory for alignment_predictor.1']
    #allocation4 [shape = 's32[1]{0}', space=sflag, size = 0x4, scoped, tag = 'scoped memory for alignment_predictor.1']
    #allocation5 [shape = 'u8[16384]{0}', space=vmem, size = 0x4000, scoped, tag = 'input window, operand 1, single buffered']
    #allocation6 [shape = 's32[1]{0}', space=sflag, size = 0x4, scoped, tag = 'scoped memory for alignment_predictor.1']
    #allocation7 [shape = 'u8[512]{0}', space=vmem, size = 0x400, scoped, tag = 'output window, operand 0, single buffered']
    %9 = vsyncpa [#allocation3], 0
    %10 = vsyncpa [#allocation6], 0
    %11 = vsyncpa [#allocation4], 0
    // Predicated region
    $region2: #{alignment_predictor.1} parent=1 // pred_check
      _
    $region3: #{alignment_predictor.1} parent=1 // pred_check_branch
      %13 = sbr.rel (0) target = $region5
    $region4: #{alignment_predictor.1} parent=1 // pred_region
      %s15 = ssub.s32 128, 128
      %16 = vsyncadd [#allocation3], %s15
      %s18 = sshll.u32 [#allocation2], 4
      %s19 = int_to_ptr.vmem [resolvable:$true] %s18
      %21 = dma.hbm_to_vmem [thread:$0]  %s0, 128, %s19, [#allocation3]
    $region5: #{alignment_predictor.1} parent=1 // pred_fallthru
      _
    // Predicated region
    $region6: #{alignment_predictor.1} parent=1 // pred_check
      _
    $region7: #{alignment_predictor.1} parent=1 // pred_check_branch
      %23 = sbr.rel (0) target = $region9
    $region8: #{alignment_predictor.1} parent=1 // pred_region
      %s25 = ssub.s32 512, 512
      %26 = vsyncadd [#allocation6], %s25
      %s27 = sshll.u32 [#allocation5], 4
      %s28 = int_to_ptr.vmem [resolvable:$true] %s27
      %33 = dma.hbm_to_vmem [thread:$0]  %s1, 512, %s28, [#allocation6], 128, 128, 8
    $region9: #{alignment_predictor.1} parent=1 // pred_fallthru
      _
    // Predicated region
    $region10: #{alignment_predictor.1} parent=1 // pred_check
      _
    $region11: #{alignment_predictor.1} parent=1 // pred_check_branch
      %35 = sbr.rel (0) target = $region13
    $region12: #{alignment_predictor.1} parent=1 // pred_region
      _
    $region13: #{alignment_predictor.1} parent=1 // pred_fallthru
      _
    // Predicated region
    $region14: #{alignment_predictor.1} parent=1 // pred_check
      _
    $region15: #{alignment_predictor.1} parent=1 // pred_check_branch
      %37 = sbr.rel (0) target = $region17
    $region16: #{alignment_predictor.1} parent=1 // pred_region
      _
    $region17: #{alignment_predictor.1} parent=1 // pred_fallthru
      _
    // Predicated region
    $region18: #{alignment_predictor.1} parent=1 // pred_check
      _
    $region19: #{alignment_predictor.1} parent=1 // pred_check_branch
      %39 = sbr.rel (0) target = $region21
    $region20: #{alignment_predictor.1} parent=1 // pred_region
      %40 = dma.done [#allocation3], 128
    $region21: #{alignment_predictor.1} parent=1 // pred_fallthru
      _
    // Predicated region
    $region22: #{alignment_predictor.1} parent=1 // pred_check
      _
    $region23: #{alignment_predictor.1} parent=1 // pred_check_branch
      %42 = sbr.rel (0) target = $region25
    $region24: #{alignment_predictor.1} parent=1 // pred_region
      %43 = dma.done [#allocation6], 512
    $region25: #{alignment_predictor.1} parent=1 // pred_fallthru
      _
    %v44 = vld [vmem:[#allocation5] sm:$0xff]
    %v45 = vld [vmem:[#allocation5 + $0x8] sm:$0xff]
    %v46 = vld [vmem:[#allocation5 + $0x10] sm:$0xff]
    %v47 = vld [vmem:[#allocation5 + $0x18] sm:$0xff]
    %v48 = vld [vmem:[#allocation2] sm:$0xff]
    %vm49 = vcmask 261120
    %v51 = vsel %vm49, %v48, 0
    %53 = vmatprep.subr.mxu0 0.0
    %54 = vmatpush1.msra.mxu0 %v44
    %55 = vmatprep.subr.mxu0 0.0
    %56 = vmatpush1.msra.mxu0 %v45
    %57 = vmatprep.subr.mxu0 0.0
    %58 = vmatpush1.msra.mxu0 %v46
    %59 = vmatprep.subr.mxu0 0.0
    %60 = vmatpush1.msra.mxu0 %v47
    %61 = vmatprep.subr.mxu0 0.0
    %62 = vmatpush1.msra.mxu0 0.0
    %63 = vmatprep.subr.mxu0 0.0
    %64 = vmatpush1.msra.mxu0 0.0
    %65 = vmatprep.subr.mxu0 0.0
    %66 = vmatpush1.msra.mxu0 0.0
    %67 = vmatprep.subr.mxu0 0.0
    %68 = vmatpush1.msra.mxu0 0.0
    %69 = vmatprep.subr.mxu0 0.0
    %70 = vmatpush1.msra.mxu0 0.0
    %71 = vmatprep.subr.mxu0 0.0
    %72 = vmatpush1.msra.mxu0 0.0
    %73 = vmatprep.subr.mxu0 0.0
    %74 = vmatpush1.msra.mxu0 0.0
    %75 = vmatprep.subr.mxu0 0.0
    %76 = vmatpush1.msra.mxu0 0.0
    %77 = vmatprep.subr.mxu0 0.0
    %78 = vmatpush1.msra.mxu0 0.0
    %79 = vmatprep.subr.mxu0 0.0
    %80 = vmatpush1.msra.mxu0 0.0
    %81 = vmatprep.subr.mxu0 0.0
    %82 = vmatpush1.msra.mxu0 0.0
    %83 = vmatprep.subr.mxu0 0.0
    %84 = vmatpush1.msra.mxu0 0.0
    %85 = vmatprep.subr.mxu0 0.0
    %86 = vmatpush1.msra.mxu0 0.0
    %87 = vmatprep.subr.mxu0 0.0
    %88 = vmatpush1.msra.mxu0 0.0
    %89 = vmatprep.subr.mxu0 0.0
    %90 = vmatpush1.msra.mxu0 0.0
    %91 = vmatprep.subr.mxu0 0.0
    %92 = vmatpush1.msra.mxu0 0.0
    %93 = vmatprep.subr.mxu0 0.0
    %94 = vmatpush1.msra.mxu0 0.0
    %95 = vmatprep.subr.mxu0 0.0
    %96 = vmatpush1.msra.mxu0 0.0
    %97 = vmatprep.subr.mxu0 0.0
    %98 = vmatpush1.msra.mxu0 0.0
    %99 = vmatprep.subr.mxu0 0.0
    %100 = vmatpush1.msra.mxu0 0.0
    %101 = vmatprep.subr.mxu0 0.0
    %102 = vmatpush1.msra.mxu0 0.0
    %103 = vmatprep.subr.mxu0 0.0
    %104 = vmatpush1.msra.mxu0 0.0
    %105 = vmatprep.subr.mxu0 0.0
    %106 = vmatpush1.msra.mxu0 0.0
    %107 = vmatprep.subr.mxu0 0.0
    %108 = vmatpush1.msra.mxu0 0.0
    %109 = vmatprep.subr.mxu0 0.0
    %110 = vmatpush1.msra.mxu0 0.0
    %111 = vmatprep.subr.mxu0 0.0
    %112 = vmatpush1.msra.mxu0 0.0
    %113 = vmatprep.subr.mxu0 0.0
    %114 = vmatpush1.msra.mxu0 0.0
    %115 = vmatprep.subr.mxu0 0.0
    %116 = vmatpush1.msra.mxu0 0.0
    %117 = vmatprep.mubr.f32.mxu0 0.0
    %118 = vmatmul.mubr.f32.gmra.mrb[0].mxu0 %v51
    %v119 = vpop.f32.mrb[0].mxu0
    %v120 = vadd.f32 0.0, %v119
    %v121 = vpop.f32.mrb[0].mxu0
    %122 = vdwg.mxu0
    %v123 = vtanh.pop %v120
    %v124 = vld [vmem:[%s2] sm:$0x1]
    %v126 = vlaneseq
    %v127 = vshrl.u32 %v126, 7
    %v128 = vsub.s32 0, %v127
    %v129 = vrot.slane %v124, %v128
    %v131 = vmul.f32 %v123, %v129
    %v132 = vsel %vm49, %v131, 0.0
    %133 = vadd.xlane.f32.xlu0 %v132
    %v134 = vpop.xlane.xlu0 %133
    %135 = vxpose.xlu0.b32.start [1/16] %v134, 128
    %136 = vxpose.xlu0.b32.cont [2/16] 0.0, 128
    %137 = vxpose.xlu0.b32.cont [3/16] 0.0, 128
    %138 = vxpose.xlu0.b32.cont [4/16] 0.0, 128
    %139 = vxpose.xlu0.b32.cont [5/16] 0.0, 128
    %140 = vxpose.xlu0.b32.cont [6/16] 0.0, 128
    %141 = vxpose.xlu0.b32.cont [7/16] 0.0, 128
    %142 = vxpose.xlu0.b32.cont [8/16] 0.0, 128
    %143 = vxpose.xlu0.b32.cont [9/16] 0.0, 128
    %144 = vxpose.xlu0.b32.cont [10/16] 0.0, 128
    %145 = vxpose.xlu0.b32.cont [11/16] 0.0, 128
    %146 = vxpose.xlu0.b32.cont [12/16] 0.0, 128
    %147 = vxpose.xlu0.b32.cont [13/16] 0.0, 128
    %148 = vxpose.xlu0.b32.cont [14/16] 0.0, 128
    %149 = vxpose.xlu0.b32.cont [15/16] 0.0, 128
    %150 = vxpose.xlu0.b32.end [16/16] 0.0, 128
    %v151 = vpop.trf.xlu0
    %v152 = vpop.trf.xlu0
    %v153 = vpop.trf.xlu0
    %v154 = vpop.trf.xlu0
    %v155 = vpop.trf.xlu0
    %v156 = vpop.trf.xlu0
    %v157 = vpop.trf.xlu0
    %v158 = vpop.trf.xlu0
    %v159 = vpop.trf.xlu0
    %v160 = vpop.trf.xlu0
    %v161 = vpop.trf.xlu0
    %v162 = vpop.trf.xlu0
    %v163 = vpop.trf.xlu0
    %v164 = vpop.trf.xlu0
    %v165 = vpop.trf.xlu0
    %v166 = vpop.trf.xlu0
    %v167 = vld [vmem:[%s3] sm:$0x1]
    %v168 = vxor.u32 %v151, 2147483648
    %v169 = vmul.f32 %v168, 1.442695
    %v170 = vpow.pop %v169
    %v171 = vadd.f32 %v170, 1.0
    %v172 = vrcp.pop %v171
    %v173 = vmul.f32 1.0, %v172
    %v174 = vmul.f32 %v167, %v173
    %vm175 = vcmask 57344
    %176 = vst.msk [vmem:[#allocation7] sm:$0x1] %vm175, %v174
    // Predicated region
    $region26: #{alignment_predictor.1} parent=1 // pred_check
      _
    $region27: #{alignment_predictor.1} parent=1 // pred_check_branch
      %178 = sbr.rel (0) target = $region29
    $region28: #{alignment_predictor.1} parent=1 // pred_region
      %s180 = ssub.s32 16, 16
      %181 = vsyncadd [#allocation4], %s180
      %s183 = sshll.u32 [#allocation7], 4
      %s184 = int_to_ptr.vmem [resolvable:$true] %s183
      %186 = dma.vmem_to_hbm [thread:$0]  %s184, 16, %s4, [#allocation4]
    $region29: #{alignment_predictor.1} parent=1 // pred_fallthru
      _
    // Predicated region
    $region30: #{alignment_predictor.1} parent=1 // pred_check
      _
    $region31: #{alignment_predictor.1} parent=1 // pred_check_branch
      %188 = sbr.rel (0) target = $region33
    $region32: #{alignment_predictor.1} parent=1 // pred_region
      %189 = dma.done [#allocation4], 16
    $region33: #{alignment_predictor.1} parent=1 // pred_fallthru
      _
    %190 = vsyncpa [#allocation3], 1
    %191 = vsyncpa [#allocation6], 1
    %192 = vsyncpa [#allocation4], 1

</llo_original>
